<compile_context>
chip_gen: v7x
topology: tpu7x:2x2x1
jax: 0.10.0
libtpu: 0.0.40
codegen_flags: <defaults>
</compile_context>

<pallas_src>
import jax
import jax.numpy as jnp
from jax.experimental import pallas as pl
from jax.experimental.pallas import tpu as pltpu


# ----------------------------------------------------------------------------- kernel
def _make_fed_kernel(compute_dtype, tm, t_full):
    full_rows = (tm == t_full)

    def kernel(x_ref, mlow_ref, low_ref, high_ref):
        # x_ref:    (T, tn)   one batch's (time, feature-tile) slab (batch dim squeezed)
        # mlow_ref: (tm, T)   row strip of the real low-pass filter matrix
        # outputs:  (tm, tn)
        x = x_ref[...]                                            # (T, tn)

        # MXU matmul, f32 accumulation.
        low = jnp.dot(mlow_ref[...], x.astype(compute_dtype),
                      preferred_element_type=jnp.float32)         # (tm, tn) f32

        if full_rows:
            x_rows = x
        else:
            # m is the innermost grid axis (index 2) in the strip-tiled path.
            row0 = pl.multiple_of(pl.program_id(2) * tm, tm)
            x_rows = x_ref[pl.ds(row0, tm), :]

        low_ref[...] = low.astype(low_ref.dtype)
        # Exact complement: M_low + M_high == I  =>  high = x - low. Rides the VPU.
        high_ref[...] = (x_rows.astype(jnp.float32) - low).astype(high_ref.dtype)

    return kernel


# ----------------------------------------------------------------------------- glue
def _build_low_pass_matrix(T, cutoff_frequency, sampling_rate):
    """Real (T, T) M_low with M_low @ x == Re(ifft(fft(x) * low_mask)) for real x."""
    freqs = jnp.fft.fftfreq(T, d=1.0 / sampling_rate)
    low_mask = (jnp.abs(freqs) <= cutoff_frequency).astype(jnp.float32)    # (T,)
    eye = jnp.eye(T, dtype=jnp.float32)
    m_low = jnp.fft.ifft(jnp.fft.fft(eye, axis=0) * low_mask[:, None], axis=0).real
    return m_low.astype(jnp.float32)


def _pick_tile(full, align, target):
    """Largest tile <= target that is a multiple of `align` and divides `full`;
    falls back to the full extent (always a legal block shape)."""
    if full <= target:
        return full
    if full % align != 0:
        return full
    t = (min(target, full) // align) * align
    while t >= align:
        if full % t == 0:
            return t
        t -= align
    return full


def fourier_embedding_decoupling(x, cutoff_frequency, sampling_rate, *,
                                 compute_dtype=jnp.float32,
                                 max_row_tile=1024, max_col_tile=1024):
    """x: [B, T, D] real. Returns (low_freq_time, high_freq_time), each [B, T, D]."""
    B, T, D = x.shape
    out_dtype = x.dtype
    x_bytes = jnp.dtype(x.dtype).itemsize
    f_bytes = jnp.dtype(compute_dtype).itemsize
    o_bytes = jnp.dtype(out_dtype).itemsize

    m_low = _build_low_pass_matrix(T, cutoff_frequency, sampling_rate).astype(compute_dtype)

    # --- VMEM budget from the actual generation's physical capacity --------------
    try:
        cap = int(pltpu.get_tpu_info().vmem_capacity_bytes)
    except Exception:
        cap = 64 << 20                      # v7x-safe fallback
    budget = (cap * 3) // 4

    def footprint(tm_, tn_, filter_bufs):
        fil = filter_bufs * tm_ * T * f_bytes            # filter strip buffer(s)
        xin = 2 * T * tn_ * x_bytes                      # double-buffered x slab
        outs = 2 * 2 * tm_ * tn_ * o_bytes               # two double-buffered outputs
        temps = T * tn_ * f_bytes + 2 * tm_ * tn_ * 4    # in-kernel cast + f32 acc/diff
        return fil + xin + outs + temps

    # Feature tile: multiple of 128 when D allows it (lane-dense stores), else full D.
    tn = _pick_tile(D, 128, max_col_tile)
    # Row tile: prefer the whole filter resident (tm == T, single buffer).
    tm = T if footprint(T, tn, 1) <= budget else _pick_tile(T, 8, max_row_tile)
    while footprint(tm, tn, 1 if tm == T else 2) > budget:
        if tn > 128 and tn % 256 == 0:
            tn //= 2                       # still a multiple of 128 dividing D
        elif tm > 8 and tm % 16 == 0:
            tm //= 2                       # still a multiple of 8 dividing T
        else:
            break
    assert T % tm == 0 and D % tn == 0, (T, tm, D, tn)
    num_m = T // tm
    num_d = D // tn
    filter_resident = (num_m == 1)

    vmem_est = footprint(tm, tn, 1 if filter_resident else 2)
    vmem_limit = int(min(max(vmem_est + (16 << 20), 24 << 20), cap - (4 << 20)))

    cost = pl.CostEstimate(
        flops=2 * B * T * T * D + B * T * D,
        bytes_accessed=B * T * D * (x_bytes + 2 * o_bytes)
                       + (1 if filter_resident else B * num_d) * T * T * f_bytes,
        transcendentals=0,
    )

    def call(filter_buffer_count):
        if filter_resident:
            grid = (B, num_d)
            x_map = lambda b, d: (b, 0, d)
            f_map = lambda b, d: (0, 0)          # constant -> stays resident, no re-DMA
            o_map = lambda b, d: (b, 0, d)
            semantics = ("parallel", "parallel")
        else:
            # m innermost: the (T, tn) x slab stays resident across filter strips;
            # only the small (tm, T) strips re-stream.
            grid = (B, num_d, num_m)
            x_map = lambda b, d, m: (b, 0, d)
            f_map = lambda b, d, m: (m, 0)
            o_map = lambda b, d, m: (b, m, d)
            semantics = ("parallel", "parallel", "arbitrary")

        if filter_buffer_count is not None and hasattr(pl, "Buffered"):
            f_spec = pl.BlockSpec((tm, T), f_map,
                                  pipeline_mode=pl.Buffered(filter_buffer_count))
        else:
            f_spec = pl.BlockSpec((tm, T), f_map)

        return pl.pallas_call(
            _make_fed_kernel(compute_dtype, tm, T),
            out_shape=(jax.ShapeDtypeStruct((B, T, D), out_dtype),
                       jax.ShapeDtypeStruct((B, T, D), out_dtype)),
            grid=grid,
            in_specs=[pl.BlockSpec((None, T, tn), x_map), f_spec],
            out_specs=[pl.BlockSpec((None, tm, tn), o_map),
                       pl.BlockSpec((None, tm, tn), o_map)],
            compiler_params=pltpu.CompilerParams(
                dimension_semantics=semantics,
                vmem_limit_bytes=vmem_limit,
            ),
            cost_estimate=cost,
        )(x, m_low)

    if filter_resident:
        # Single-buffer the resident filter; fall back to the plain spec if this
        # JAX version rejects pipeline_mode / Buffered(1).
        try:
            return call(1)
        except Exception:
            return call(None)
    return call(None)


# ----------------------------------------------------------------------------- reference
def _reference(x, cutoff_frequency, sampling_rate):
    # Pure-JAX reference mirroring the PyTorch module exactly (for real input).
    T = x.shape[1]
    xf = jnp.fft.fft(x, axis=1)
    freqs = jnp.fft.fftfreq(T, d=1.0 / sampling_rate)
    low_mask = (jnp.abs(freqs) <= cutoff_frequency)[None, :, None]
    high_mask = (jnp.abs(freqs) > cutoff_frequency)[None, :, None]
    low = jnp.fft.ifft(xf * low_mask, axis=1).real
    high = jnp.fft.ifft(xf * high_mask, axis=1).real
    return low, high


if __name__ == "__main__":
    B, T, D = 2, 16, 32
    cutoff_frequency = 2.0
    sampling_rate = 16.0

    key = jax.random.PRNGKey(0)
    x = jax.random.normal(key, (B, T, D), dtype=jnp.float32)

    ref_low, ref_high = _reference(x, cutoff_frequency, sampling_rate)

    # f32 path (tight tolerance).
    low, high = fourier_embedding_decoupling(x, cutoff_frequency, sampling_rate)
    jax.block_until_ready((low, high))
    assert low.shape == (B, T, D) and high.shape == (B, T, D)
    assert jnp.allclose(low, ref_low, atol=1e-4, rtol=1e-4)
    assert jnp.allclose(high, ref_high, atol=1e-4, rtol=1e-4)

    # bf16-operand / f32-accumulation MXU path (looser tolerance).
    low_bf, high_bf = fourier_embedding_decoupling(
        x, cutoff_frequency, sampling_rate, compute_dtype=jnp.bfloat16)
    jax.block_until_ready((low_bf, high_bf))
    assert jnp.allclose(low_bf, ref_low, atol=5e-2, rtol=5e-2)
    assert jnp.allclose(high_bf, ref_high, atol=5e-2, rtol=5e-2)

    print("KERNEL_OK")
</pallas_src>

<mosaic_0001>
module attributes {stable_mosaic.version = 11 : i64} {
  func.func @kernel(%arg0: i32, %arg1: i32, %arg2: memref<1x16x32xf32, #tpu.memory_space<vmem>>, %arg3: memref<16x16xf32, #tpu.memory_space<vmem>>, %arg4: memref<1x16x32xf32, #tpu.memory_space<vmem>>, %arg5: memref<1x16x32xf32, #tpu.memory_space<vmem>>) attributes {dimension_semantics = [#tpu.dimension_semantics<parallel>, #tpu.dimension_semantics<parallel>], iteration_bounds = array<i64: 2, 1>, scalar_prefetch = 0 : i64, scratch_operands = 0 : i64, tpu.core_type = #tpu.core_type<tc>, window_params = [{transform_indices = @transform_0, window_bounds = array<i64: 1, 16, 32>}, {pipeline_mode = #tpu.pipeline_mode<synchronous>, transform_indices = @transform_1, window_bounds = array<i64: 16, 16>}, {transform_indices = @transform_2, window_bounds = array<i64: 1, 16, 32>}, {transform_indices = @transform_3, window_bounds = array<i64: 1, 16, 32>}]} {
    %c0 = arith.constant 0 : index
    %c0_0 = arith.constant 0 : index
    %c0_1 = arith.constant 0 : index
    %0 = vector.load %arg2[%c0, %c0_0, %c0_1] : memref<1x16x32xf32, #tpu.memory_space<vmem>>, vector<1x16x32xf32>
    %1 = vector.shape_cast %0 : vector<1x16x32xf32> to vector<16x32xf32>
    %c0_2 = arith.constant 0 : index
    %c0_3 = arith.constant 0 : index
    %2 = vector.load %arg3[%c0_2, %c0_3] : memref<16x16xf32, #tpu.memory_space<vmem>>, vector<16x16xf32>
    %cst = arith.constant dense<0.000000e+00> : vector<16x32xf32>
    %3 = tpu.matmul %2, %1, %cst {dimension_numbers = #tpu.dot_dimension_numbers<[1], [0], [0], [1], [0, 0, 1, 1], [], []>} : vector<16x16xf32>, vector<16x32xf32>, vector<16x32xf32> -> vector<16x32xf32>
    %c0_4 = arith.constant 0 : index
    %c0_5 = arith.constant 0 : index
    %c0_6 = arith.constant 0 : index
    %4 = vector.load %arg4[%c0_4, %c0_5, %c0_6] : memref<1x16x32xf32, #tpu.memory_space<vmem>>, vector<1x16x32xf32>
    %5 = vector.shape_cast %4 : vector<1x16x32xf32> to vector<16x32xf32>
    %6 = vector.shape_cast %3 : vector<16x32xf32> to vector<1x16x32xf32>
    tpu.vector_store %arg4[%c0_4, %c0_5, %c0_6], %6 {strides = array<i32>} : memref<1x16x32xf32, #tpu.memory_space<vmem>>, vector<1x16x32xf32>,
    %7 = arith.subf %1, %3 : vector<16x32xf32>
    %c0_7 = arith.constant 0 : index
    %c0_8 = arith.constant 0 : index
    %c0_9 = arith.constant 0 : index
    %8 = vector.load %arg5[%c0_7, %c0_8, %c0_9] : memref<1x16x32xf32, #tpu.memory_space<vmem>>, vector<1x16x32xf32>
    %9 = vector.shape_cast %8 : vector<1x16x32xf32> to vector<16x32xf32>
    %10 = vector.shape_cast %7 : vector<16x32xf32> to vector<1x16x32xf32>
    tpu.vector_store %arg5[%c0_7, %c0_8, %c0_9], %10 {strides = array<i32>} : memref<1x16x32xf32, #tpu.memory_space<vmem>>, vector<1x16x32xf32>,
    return
  }
  func.func @transform_0(%arg0: i32, %arg1: i32) -> (i32, i32, i32) {
    %c0_i32 = arith.constant 0 : i32
    %c0_i32_0 = arith.constant 0 : i32
    return %arg0, %c0_i32, %arg1 : i32, i32, i32
  }
  func.func @transform_1(%arg0: i32, %arg1: i32) -> (i32, i32) {
    %c0_i32 = arith.constant 0 : i32
    %c0_i32_0 = arith.constant 0 : i32
    %c0_i32_1 = arith.constant 0 : i32
    return %c0_i32, %c0_i32_0 : i32, i32
  }
  func.func @transform_2(%arg0: i32, %arg1: i32) -> (i32, i32, i32) {
    %c0_i32 = arith.constant 0 : i32
    %c0_i32_0 = arith.constant 0 : i32
    return %arg0, %c0_i32, %arg1 : i32, i32, i32
  }
  func.func @transform_3(%arg0: i32, %arg1: i32) -> (i32, i32, i32) {
    %c0_i32 = arith.constant 0 : i32
    %c0_i32_0 = arith.constant 0 : i32
    return %arg0, %c0_i32, %arg1 : i32, i32, i32
  }
}

module attributes {stable_mosaic.version = 11 : i64} {
  func.func @kernel(%arg0: i32, %arg1: i32, %arg2: memref<1x16x32xf32, #tpu.memory_space<vmem>>, %arg3: memref<16x16xf32, #tpu.memory_space<vmem>>, %arg4: memref<1x16x32xf32, #tpu.memory_space<vmem>>, %arg5: memref<1x16x32xf32, #tpu.memory_space<vmem>>) attributes {dimension_semantics = [#tpu.dimension_semantics<parallel>, #tpu.dimension_semantics<parallel>], iteration_bounds = array<i64: 2, 1>, scalar_prefetch = 0 : i64, scratch_operands = 0 : i64, tpu.core_type = #tpu.core_type<tc>, window_params = [{transform_indices = @transform_0, window_bounds = array<i64: 1, 16, 32>}, {pipeline_mode = #tpu.pipeline_mode<synchronous>, transform_indices = @transform_1, window_bounds = array<i64: 16, 16>}, {transform_indices = @transform_2, window_bounds = array<i64: 1, 16, 32>}, {transform_indices = @transform_3, window_bounds = array<i64: 1, 16, 32>}]} {
    %c0 = arith.constant 0 : index
    %c0_0 = arith.constant 0 : index
    %c0_1 = arith.constant 0 : index
    %0 = vector.load %arg2[%c0, %c0_0, %c0_1] : memref<1x16x32xf32, #tpu.memory_space<vmem>>, vector<1x16x32xf32>
    %1 = vector.shape_cast %0 : vector<1x16x32xf32> to vector<16x32xf32>
    %c0_2 = arith.constant 0 : index
    %c0_3 = arith.constant 0 : index
    %2 = vector.load %arg3[%c0_2, %c0_3] : memref<16x16xf32, #tpu.memory_space<vmem>>, vector<16x16xf32>
    %cst = arith.constant dense<0.000000e+00> : vector<16x32xf32>
    %3 = tpu.matmul %2, %1, %cst {dimension_numbers = #tpu.dot_dimension_numbers<[1], [0], [0], [1], [0, 0, 1, 1], [], []>} : vector<16x16xf32>, vector<16x32xf32>, vector<16x32xf32> -> vector<16x32xf32>
    %c0_4 = arith.constant 0 : index
    %c0_5 = arith.constant 0 : index
    %c0_6 = arith.constant 0 : index
    %4 = vector.load %arg4[%c0_4, %c0_5, %c0_6] : memref<1x16x32xf32, #tpu.memory_space<vmem>>, vector<1x16x32xf32>
    %5 = vector.shape_cast %4 : vector<1x16x32xf32> to vector<16x32xf32>
    %6 = vector.shape_cast %3 : vector<16x32xf32> to vector<1x16x32xf32>
    tpu.vector_store %arg4[%c0_4, %c0_5, %c0_6], %6 {strides = array<i32>} : memref<1x16x32xf32, #tpu.memory_space<vmem>>, vector<1x16x32xf32>,
    %7 = arith.subf %1, %3 : vector<16x32xf32>
    %c0_7 = arith.constant 0 : index
    %c0_8 = arith.constant 0 : index
    %c0_9 = arith.constant 0 : index
    %8 = vector.load %arg5[%c0_7, %c0_8, %c0_9] : memref<1x16x32xf32, #tpu.memory_space<vmem>>, vector<1x16x32xf32>
    %9 = vector.shape_cast %8 : vector<1x16x32xf32> to vector<16x32xf32>
    %10 = vector.shape_cast %7 : vector<16x32xf32> to vector<1x16x32xf32>
    tpu.vector_store %arg5[%c0_7, %c0_8, %c0_9], %10 {strides = array<i32>} : memref<1x16x32xf32, #tpu.memory_space<vmem>>, vector<1x16x32xf32>,
    return
  }
  func.func @transform_0(%arg0: i32, %arg1: i32) -> (i32, i32, i32) {
    %c0_i32 = arith.constant 0 : i32
    %c0_i32_0 = arith.constant 0 : i32
    return %arg0, %c0_i32, %arg1 : i32, i32, i32
  }
  func.func @transform_1(%arg0: i32, %arg1: i32) -> (i32, i32) {
    %c0_i32 = arith.constant 0 : i32
    %c0_i32_0 = arith.constant 0 : i32
    %c0_i32_1 = arith.constant 0 : i32
    return %c0_i32, %c0_i32_0 : i32, i32
  }
  func.func @transform_2(%arg0: i32, %arg1: i32) -> (i32, i32, i32) {
    %c0_i32 = arith.constant 0 : i32
    %c0_i32_0 = arith.constant 0 : i32
    return %arg0, %c0_i32, %arg1 : i32, i32, i32
  }
  func.func @transform_3(%arg0: i32, %arg1: i32) -> (i32, i32, i32) {
    %c0_i32 = arith.constant 0 : i32
    %c0_i32_0 = arith.constant 0 : i32
    return %arg0, %c0_i32, %arg1 : i32, i32, i32
  }
}

</mosaic_0001>

<llo_original>
// kernel: tpu_custom_call.1
$region0: #{tpu_custom_call.1}
  #allocation0 [shape = 'u32[]', space=smem, size = 0x4, offset = 0x4, fixed_abs, tag = 'smem constant byte address 0x4 - core index']
  #allocation1 [shape = 'u32[144,128]{1,0:T(1,128)}', space=vmem, size = 0x12000, scoped, tag = 'internal scratch']
  %s0 = inlined_call_operand.hbm [shape: f32[2,16,32], index: 0, kind: input, shape index: {}]
  %s1 = inlined_call_operand.hbm [shape: f32[16,16], index: 1, kind: input, shape index: {}]
  %s2 = inlined_call_operand.hbm [shape: f32[2,16,32], index: 2, kind: output, shape index: {0}]
  %s3 = inlined_call_operand.hbm [shape: f32[2,16,32], index: 3, kind: output, shape index: {1}]
  %4 = xla_tuple %s2, %s3
  %s5 = sld [smem:[#allocation0]]
  $region57: #{tpu_custom_call.1} parent=0
    _
  %s7 = ssub.s32 1, %s5
  %s8 = scalar_select 0, %s7, %s5
  $region1: #{tpu_custom_call.1} parent=0
    #allocation2 [shape = 'u8[16384]{0}', space=vmem, size = 0x4000, scoped, tag = 'input window, operand 0']
    #allocation3 [shape = 's32[2]{0}', space=sflag, size = 0x8, scoped, tag = 'scoped memory for tpu_custom_call.1']
    #allocation4 [shape = 's32[2]{0}', space=sflag, size = 0x8, scoped, tag = 'scoped memory for tpu_custom_call.1']
    #allocation5 [shape = 'u8[8192]{0}', space=vmem, size = 0x2000, scoped, tag = 'input window, operand 1, single buffered']
    #allocation6 [shape = 's32[1]{0}', space=sflag, size = 0x4, scoped, tag = 'scoped memory for tpu_custom_call.1']
    #allocation7 [shape = 'u8[16384]{0}', space=vmem, size = 0x4000, scoped, tag = 'output window, operand 0']
    #allocation8 [shape = 'u8[16384]{0}', space=vmem, size = 0x4000, scoped, tag = 'output window, operand 1']
    #allocation9 [shape = 's32[2]{0}', space=sflag, size = 0x8, scoped, tag = 'scoped memory for tpu_custom_call.1']
    %9 = vsyncpa [#allocation3], 0
    %s10 = scalar_lea.sflag [#allocation3], 1
    %11 = vsyncpa %s10, 0
    %12 = vsyncpa [#allocation6], 0
    %13 = vsyncpa [#allocation4], 0
    %s14 = scalar_lea.sflag [#allocation4], 1
    %15 = vsyncpa %s14, 0
    %16 = vsyncpa [#allocation9], 0
    %s17 = scalar_lea.sflag [#allocation9], 1
    %18 = vsyncpa %s17, 0
    loop: start=0, step=1, limit=4
    $region2: #{tpu_custom_call.1} parent=1 // loop_pre_header
      _
    $region3: #{tpu_custom_call.1} parent=1 // loop_header
      %s20 = sphi 0, %s24
      %p21 = scmp.ge.s32.totalorder %s20, 4
      %s27 = sphi 0, %s39
      %s28 = sphi 0, %s35
      %s29 = sphi 0, %s27
      %s30 = sphi 0, %s28
      %s31 = sphi 0, %s29
      %s32 = sphi 0, %s30
      %s44 = sphi 0, %s46
      %s47 = sphi 0, %s44
      %s48 = sphi 0, %s47
      %s64 = sphi 0, %s48
      %s68 = sphi 0, %s68
      %s70 = sphi 0, %s68
      %s71 = sphi 0, %s70
      %s85 = sphi 0, %s71
      %s93 = sphi 0, %s95
      %s96 = sphi 0, %s93
      %s97 = sphi 0, %s96
      %s113 = sphi 0, %s97
      %s121 = sphi 0, %s123
      %s124 = sphi 0, %s121
      %s125 = sphi 0, %s124
      %s141 = sphi 0, %s125
    $region4: #{tpu_custom_call.1} parent=1 // loop_header_branch
      %23 = sbr.rel (%p21) target = $region8
    $region5: #{tpu_custom_call.1} parent=1 // loop_body
      %s25 = ssub.s32 %s20, 1
      %s26 = ssub.s32 %s20, 2
      %s33 = sadd.s32 1, %s28
      %p34 = scmp.ge.s32.totalorder %s33, 1
      %s35 = scalar_select %p34, 0, %s33
      %s36 = sadd.s32 1, %s27
      %s37 = scalar_select %p34, %s36, %s27
      %p38 = scmp.ge.s32.totalorder %s37, 2
      %s39 = scalar_select %p38, 0, %s37
      %s40 = ssub.s32 %s27, %s39
      %s41 = ssub.s32 %s28, %s35
      %s42 = sor.u32 %s40, %s41
      %p43 = scmp.eq.s32.totalorder %s42, 0
      %s45 = sadd.s32 %s44, 1
      %s46 = scalar_select %p43, %s44, %s45
      %p49 = pneg %p43
      %p50 = scmp.eq.s32.totalorder %s20, 1
      %p51 = por %p49, %p50
      %p52 = scmp.ne.s32.totalorder %s44, %s47
      %p53 = scmp.eq.s32.totalorder %s20, 0
      %p54 = por %p52, %p53
      %p55 = scmp.ne.s32.totalorder %s44, %s47
      %p56 = scmp.eq.s32.totalorder %s25, 1
      %p57 = por %p55, %p56
      %p58 = scmp.ne.s32.totalorder %s47, %s48
      %p59 = scmp.eq.s32.totalorder %s25, 0
      %p60 = por %p58, %p59
      %p61 = scmp.ne.s32.totalorder %s47, %s48
      %p62 = scmp.eq.s32.totalorder %s26, 1
      %p63 = por %p61, %p62
      %p65 = scmp.ne.s32.totalorder %s48, %s64
      %p66 = scmp.eq.s32.totalorder %s26, 0
      %p67 = por %p65, %p66
      %s69 = sadd.s32 %s68, 1
      %p72 = scmp.eq.s32.totalorder %s20, 1
      %p73 = scmp.ne.s32.totalorder %s68, %s70
      %p74 = scmp.eq.s32.totalorder %s20, 0
      %p75 = por %p73, %p74
      %p76 = scmp.ne.s32.totalorder %s68, %s70
      %p77 = scmp.eq.s32.totalorder %s25, 1
      %p78 = por %p76, %p77
      %p79 = scmp.ne.s32.totalorder %s70, %s71
      %p80 = scmp.eq.s32.totalorder %s25, 0
      %p81 = por %p79, %p80
      %p82 = scmp.ne.s32.totalorder %s70, %s71
      %p83 = scmp.eq.s32.totalorder %s26, 1
      %p84 = por %p82, %p83
      %p86 = scmp.ne.s32.totalorder %s71, %s85
      %p87 = scmp.eq.s32.totalorder %s26, 0
      %p88 = por %p86, %p87
      %s89 = ssub.s32 %s27, %s39
      %s90 = ssub.s32 %s28, %s35
      %s91 = sor.u32 %s89, %s90
      %p92 = scmp.eq.s32.totalorder %s91, 0
      %s94 = sadd.s32 %s93, 1
      %s95 = scalar_select %p92, %s93, %s94
      %p98 = pneg %p92
      %p99 = scmp.eq.s32.totalorder %s20, 1
      %p100 = por %p98, %p99
      %p101 = scmp.ne.s32.totalorder %s93, %s96
      %p102 = scmp.eq.s32.totalorder %s20, 0
      %p103 = por %p101, %p102
      %p104 = scmp.ne.s32.totalorder %s93, %s96
      %p105 = scmp.eq.s32.totalorder %s25, 1
      %p106 = por %p104, %p105
      %p107 = scmp.ne.s32.totalorder %s96, %s97
      %p108 = scmp.eq.s32.totalorder %s25, 0
      %p109 = por %p107, %p108
      %p110 = scmp.ne.s32.totalorder %s96, %s97
      %p111 = scmp.eq.s32.totalorder %s26, 1
      %p112 = por %p110, %p111
      %p114 = scmp.ne.s32.totalorder %s97, %s113
      %p115 = scmp.eq.s32.totalorder %s26, 0
      %p116 = por %p114, %p115
      %s117 = ssub.s32 %s27, %s39
      %s118 = ssub.s32 %s28, %s35
      %s119 = sor.u32 %s117, %s118
      %p120 = scmp.eq.s32.totalorder %s119, 0
      %s122 = sadd.s32 %s121, 1
      %s123 = scalar_select %p120, %s121, %s122
      %p126 = pneg %p120
      %p127 = scmp.eq.s32.totalorder %s20, 1
      %p128 = por %p126, %p127
      %p129 = scmp.ne.s32.totalorder %s121, %s124
      %p130 = scmp.eq.s32.totalorder %s20, 0
      %p131 = por %p129, %p130
      %p132 = scmp.ne.s32.totalorder %s121, %s124
      %p133 = scmp.eq.s32.totalorder %s25, 1
      %p134 = por %p132, %p133
      %p135 = scmp.ne.s32.totalorder %s124, %s125
      %p136 = scmp.eq.s32.totalorder %s25, 0
      %p137 = por %p135, %p136
      %p138 = scmp.ne.s32.totalorder %s124, %s125
      %p139 = scmp.eq.s32.totalorder %s26, 1
      %p140 = por %p138, %p139
      %p142 = scmp.ne.s32.totalorder %s125, %s141
      %p143 = scmp.eq.s32.totalorder %s26, 0
      %p144 = por %p142, %p143
      %p145 = scmp.le.s32.totalorder 1, %s20
      %p146 = scmp.lt.s32.totalorder %s20, 3
      %p147 = pnand %p145, %p146
      %p148 = pneg %p147
      // Predicated region
      $region9: #{tpu_custom_call.1} parent=5 // pred_check
        _
      $region10: #{tpu_custom_call.1} parent=5 // pred_check_branch
        %150 = sbr.rel (%p147) target = $region12
      $region11: #{tpu_custom_call.1} parent=5 // pred_region
        %s151 = ssub.s32 %s20, 1
        // Predicated region
        $region13: #{tpu_custom_call.1} parent=11 // pred_check
          %p152 = pneg %p81
        $region14: #{tpu_custom_call.1} parent=11 // pred_check_branch
          %154 = sbr.rel (%p152) target = $region16
        $region15: #{tpu_custom_call.1} parent=11 // pred_region
          %s156 = ssub.s32 256, 256
          %157 = vsyncadd [#allocation6], %s156
          %s158 = sshll.u32 [#allocation5], 4
          %s159 = int_to_ptr.vmem [resolvable:$true] %s158
          %164 = dma.hbm_to_vmem [thread:$0]  %s1, 256, %s159, [#allocation6], 128, 128, 8
        $region16: #{tpu_custom_call.1} parent=11 // pred_fallthru
          _
      $region12: #{tpu_custom_call.1} parent=5 // pred_fallthru
        _
      %p165 = scmp.lt.s32.totalorder %s20, 2
      // Predicated region
      $region17: #{tpu_custom_call.1} parent=5 // pred_check
        %p166 = pneg %p165
      $region18: #{tpu_custom_call.1} parent=5 // pred_check_branch
        %168 = sbr.rel (%p166) target = $region20
      $region19: #{tpu_custom_call.1} parent=5 // pred_region
        // Predicated region
        $region21: #{tpu_custom_call.1} parent=19 // pred_check
          %p169 = pneg %p54
        $region22: #{tpu_custom_call.1} parent=19 // pred_check_branch
          %171 = sbr.rel (%p169) target = $region24
        $region23: #{tpu_custom_call.1} parent=19 // pred_region
          %s172 = sand.u32 %s44, 1
          %s173 = scalar_lea.sflag [#allocation3], %s172
          %s174 = sand.u32 %s44, 1
          %s175 = smul.addr %s174, 16
          %s176 = scalar_lea.vmem [#allocation2], %s175
          %s178 = ssub.s32 256, 256
          %179 = vsyncadd %s173, %s178
          %s180 = smul.addr %s27, 2
          %s181 = sadd.s32 %s28, %s180
          %s182 = smul.addr %s181, 128
          %s183 = scalar_lea.hbm %s0, %s182
          %s184 = sshll.u32 %s176, 4
          %s185 = int_to_ptr.vmem [resolvable:$true] %s184
          %190 = dma.hbm_to_vmem [thread:$0]  %s183, 256, %s185, %s173, 128, 128, 8
        $region24: #{tpu_custom_call.1} parent=19 // pred_fallthru
          _
      $region20: #{tpu_custom_call.1} parent=5 // pred_fallthru
        _
      %p191 = scmp.le.s32.totalorder 1, %s20
      %p192 = scmp.lt.s32.totalorder %s20, 3
      %p193 = pnand %p191, %p192
      %p194 = pneg %p193
      // Predicated region
      $region25: #{tpu_custom_call.1} parent=5 // pred_check
        _
      $region26: #{tpu_custom_call.1} parent=5 // pred_check_branch
        %196 = sbr.rel (%p193) target = $region28
      $region27: #{tpu_custom_call.1} parent=5 // pred_region
        %s197 = ssub.s32 %s20, 1
        %s198 = sand.u32 %s47, 1
        %s199 = scalar_lea.sflag [#allocation3], %s198
        %s200 = sand.u32 %s47, 1
        %s201 = smul.addr %s200, 16
        %s202 = scalar_lea.vmem [#allocation2], %s201
        // Predicated region
        $region29: #{tpu_custom_call.1} parent=27 // pred_check
          %p203 = pneg %p60
        $region30: #{tpu_custom_call.1} parent=27 // pred_check_branch
          %205 = sbr.rel (%p203) target = $region32
        $region31: #{tpu_custom_call.1} parent=27 // pred_region
          %206 = dma.done %s199, 256
        $region32: #{tpu_custom_call.1} parent=27 // pred_fallthru
          _
        // Predicated region
        $region33: #{tpu_custom_call.1} parent=27 // pred_check
          %p207 = pneg %p81
        $region34: #{tpu_custom_call.1} parent=27 // pred_check_branch
          %209 = sbr.rel (%p207) target = $region36
        $region35: #{tpu_custom_call.1} parent=27 // pred_region
          %210 = dma.done [#allocation6], 256
        $region36: #{tpu_custom_call.1} parent=27 // pred_fallthru
          _
        %s211 = sand.u32 %s47, 1
        %s212 = scalar_lea.sflag [#allocation3], %s211
        %s213 = sand.u32 %s47, 1
        %s214 = smul.addr %s213, 16
        %s215 = scalar_lea.vmem [#allocation2], %s214
        %p216 = pneg %p60
        %p217 = pneg %p57
        %p218 = pneg %p81
        %p219 = pneg %p78
        %p220 = pneg %p109
        %p221 = pneg %p106
        %s222 = sand.u32 %s96, 1
        %s223 = scalar_lea.sflag [#allocation4], %s222
        %s224 = sand.u32 %s96, 1
        %s225 = smul.addr %s224, 16
        %s226 = scalar_lea.vmem [#allocation7], %s225
        %p227 = pneg %p137
        %p228 = pneg %p134
        %s229 = sand.u32 %s124, 1
        %s230 = scalar_lea.sflag [#allocation9], %s229
        %s231 = sand.u32 %s124, 1
        %s232 = smul.addr %s231, 16
        %s233 = scalar_lea.vmem [#allocation8], %s232
        %v234 = vld [vmem:[%s202] sm:$0xff]
        %v235 = vld [vmem:[%s202 + $0x8] sm:$0xff]
        %v236 = vld [vmem:[#allocation5] sm:$0xff]
        %v237 = vld [vmem:[#allocation5 + $0x8] sm:$0xff]
        %vm238 = vcmask 130048
        %v240 = vsel %vm238, %v236, 0
        %v243 = vsel %vm238, %v237, 0
        %245 = vmatprep.subr.mxu0 0.0
        %246 = vmatpush1.msra.mxu0 %v234
        %247 = vmatprep.subr.mxu0 0.0
        %248 = vmatpush1.msra.mxu0 %v235
        %249 = vmatprep.subr.mxu0 0.0
        %250 = vmatpush1.msra.mxu0 0.0
        %251 = vmatprep.subr.mxu0 0.0
        %252 = vmatpush1.msra.mxu0 0.0
        %253 = vmatprep.subr.mxu0 0.0
        %254 = vmatpush1.msra.mxu0 0.0
        %255 = vmatprep.subr.mxu0 0.0
        %256 = vmatpush1.msra.mxu0 0.0
        %257 = vmatprep.subr.mxu0 0.0
        %258 = vmatpush1.msra.mxu0 0.0
        %259 = vmatprep.subr.mxu0 0.0
        %260 = vmatpush1.msra.mxu0 0.0
        %261 = vmatprep.subr.mxu0 0.0
        %262 = vmatpush1.msra.mxu0 0.0
        %263 = vmatprep.subr.mxu0 0.0
        %264 = vmatpush1.msra.mxu0 0.0
        %265 = vmatprep.subr.mxu0 0.0
        %266 = vmatpush1.msra.mxu0 0.0
        %267 = vmatprep.subr.mxu0 0.0
        %268 = vmatpush1.msra.mxu0 0.0
        %269 = vmatprep.subr.mxu0 0.0
        %270 = vmatpush1.msra.mxu0 0.0
        %271 = vmatprep.subr.mxu0 0.0
        %272 = vmatpush1.msra.mxu0 0.0
        %273 = vmatprep.subr.mxu0 0.0
        %274 = vmatpush1.msra.mxu0 0.0
        %275 = vmatprep.subr.mxu0 0.0
        %276 = vmatpush1.msra.mxu0 0.0
        %277 = vmatprep.subr.mxu0 0.0
        %278 = vmatpush1.msra.mxu0 0.0
        %279 = vmatprep.subr.mxu0 0.0
        %280 = vmatpush1.msra.mxu0 0.0
        %281 = vmatprep.subr.mxu0 0.0
        %282 = vmatpush1.msra.mxu0 0.0
        %283 = vmatprep.subr.mxu0 0.0
        %284 = vmatpush1.msra.mxu0 0.0
        %285 = vmatprep.subr.mxu0 0.0
        %286 = vmatpush1.msra.mxu0 0.0
        %287 = vmatprep.subr.mxu0 0.0
        %288 = vmatpush1.msra.mxu0 0.0
        %289 = vmatprep.subr.mxu0 0.0
        %290 = vmatpush1.msra.mxu0 0.0
        %291 = vmatprep.subr.mxu0 0.0
        %292 = vmatpush1.msra.mxu0 0.0
        %293 = vmatprep.subr.mxu0 0.0
        %294 = vmatpush1.msra.mxu0 0.0
        %295 = vmatprep.subr.mxu0 0.0
        %296 = vmatpush1.msra.mxu0 0.0
        %297 = vmatprep.subr.mxu0 0.0
        %298 = vmatpush1.msra.mxu0 0.0
        %299 = vmatprep.subr.mxu0 0.0
        %300 = vmatpush1.msra.mxu0 0.0
        %301 = vmatprep.subr.mxu0 0.0
        %302 = vmatpush1.msra.mxu0 0.0
        %303 = vmatprep.subr.mxu0 0.0
        %304 = vmatpush1.msra.mxu0 0.0
        %305 = vmatprep.subr.mxu0 0.0
        %306 = vmatpush1.msra.mxu0 0.0
        %307 = vmatprep.subr.mxu0 0.0
        %308 = vmatpush1.msra.mxu0 0.0
        %309 = vmatprep.mubr.f32.mxu0 0.0
        %310 = vmatmul.mubr.f32.gmra.mrb[0].mxu0 %v240
        %v311 = vpop.f32.mrb[0].mxu0
        %v312 = vadd.f32 0.0, %v311
        %v313 = vpop.f32.mrb[0].mxu0
        %314 = vmatprep.mubr.f32.mxu0 0.0
        %315 = vmatmul.mubr.f32.gmra.mrb[0].mxu0 %v243
        %v316 = vpop.f32.mrb[0].mxu0
        %v317 = vadd.f32 0.0, %v316
        %v318 = vpop.f32.mrb[0].mxu0
        %319 = vdwg.mxu0
        %vm320 = vcmask 261120
        %321 = vst.msk [vmem:[%s226] sm:$0xff] %vm320, %v312
        %322 = vst.msk [vmem:[%s226 + $0x8] sm:$0xff] %vm320, %v317
        %v323 = vsub.f32 %v234, %v312
        %v324 = vsub.f32 %v235, %v317
        %325 = vst.msk [vmem:[%s233] sm:$0xff] %vm320, %v323
        %326 = vst.msk [vmem:[%s233 + $0x8] sm:$0xff] %vm320, %v324
        %s327 = sand.u32 %s96, 1
        %s328 = scalar_lea.sflag [#allocation4], %s327
        %s329 = sand.u32 %s96, 1
        %s330 = smul.addr %s329, 16
        %s331 = scalar_lea.vmem [#allocation7], %s330
        %s332 = sand.u32 %s124, 1
        %s333 = scalar_lea.sflag [#allocation9], %s332
        %s334 = sand.u32 %s124, 1
        %s335 = smul.addr %s334, 16
        %s336 = scalar_lea.vmem [#allocation8], %s335
        // Predicated region
        $region37: #{tpu_custom_call.1} parent=27 // pred_check
          %p337 = pneg %p106
        $region38: #{tpu_custom_call.1} parent=27 // pred_check_branch
          %339 = sbr.rel (%p337) target = $region40
        $region39: #{tpu_custom_call.1} parent=27 // pred_region
          %s341 = ssub.s32 256, 256
          %342 = vsyncadd %s328, %s341
          %s343 = smul.addr %s29, 2
          %s344 = sadd.s32 %s30, %s343
          %s345 = smul.addr %s344, 128
          %s346 = scalar_lea.hbm %s2, %s345
          %s347 = sshll.u32 %s331, 4
          %s348 = int_to_ptr.vmem [resolvable:$true] %s347
          %353 = dma.vmem_to_hbm [thread:$0]  %s348, 256, %s346, %s328, 128, 128, 8
        $region40: #{tpu_custom_call.1} parent=27 // pred_fallthru
          _
        // Predicated region
        $region41: #{tpu_custom_call.1} parent=27 // pred_check
          %p354 = pneg %p134
        $region42: #{tpu_custom_call.1} parent=27 // pred_check_branch
          %356 = sbr.rel (%p354) target = $region44
        $region43: #{tpu_custom_call.1} parent=27 // pred_region
          %s358 = ssub.s32 256, 256
          %359 = vsyncadd %s333, %s358
          %s360 = smul.addr %s29, 2
          %s361 = sadd.s32 %s30, %s360
          %s362 = smul.addr %s361, 128
          %s363 = scalar_lea.hbm %s3, %s362
          %s364 = sshll.u32 %s336, 4
          %s365 = int_to_ptr.vmem [resolvable:$true] %s364
          %370 = dma.vmem_to_hbm [thread:$0]  %s365, 256, %s363, %s333, 128, 128, 8
        $region44: #{tpu_custom_call.1} parent=27 // pred_fallthru
          _
      $region28: #{tpu_custom_call.1} parent=5 // pred_fallthru
        _
      %p371 = scmp.le.s32.totalorder 2, %s20
      // Predicated region
      $region45: #{tpu_custom_call.1} parent=5 // pred_check
        %p372 = pneg %p371
      $region46: #{tpu_custom_call.1} parent=5 // pred_check_branch
        %374 = sbr.rel (%p372) target = $region48
      $region47: #{tpu_custom_call.1} parent=5 // pred_region
        %s375 = ssub.s32 %s20, 2
        // Predicated region
        $region49: #{tpu_custom_call.1} parent=47 // pred_check
          %p376 = pneg %p112
        $region50: #{tpu_custom_call.1} parent=47 // pred_check_branch
          %378 = sbr.rel (%p376) target = $region52
        $region51: #{tpu_custom_call.1} parent=47 // pred_region
          %s379 = sand.u32 %s97, 1
          %s380 = scalar_lea.sflag [#allocation4], %s379
          %s381 = sand.u32 %s97, 1
          %s382 = smul.addr %s381, 16
          %s383 = scalar_lea.vmem [#allocation7], %s382
          %384 = dma.done %s380, 256
        $region52: #{tpu_custom_call.1} parent=47 // pred_fallthru
          _
        // Predicated region
        $region53: #{tpu_custom_call.1} parent=47 // pred_check
          %p385 = pneg %p140
        $region54: #{tpu_custom_call.1} parent=47 // pred_check_branch
          %387 = sbr.rel (%p385) target = $region56
        $region55: #{tpu_custom_call.1} parent=47 // pred_region
          %s388 = sand.u32 %s125, 1
          %s389 = scalar_lea.sflag [#allocation9], %s388
          %s390 = sand.u32 %s125, 1
          %s391 = smul.addr %s390, 16
          %s392 = scalar_lea.vmem [#allocation8], %s391
          %393 = dma.done %s389, 256
        $region56: #{tpu_custom_call.1} parent=47 // pred_fallthru
          _
      $region48: #{tpu_custom_call.1} parent=5 // pred_fallthru
        _
    $region6: #{tpu_custom_call.1} parent=1 // loop_footer
      %s24 = sadd.s32 1, %s20
    $region7: #{tpu_custom_call.1} parent=1 // loop_footer_branch
      %19 = sbr.rel target = $region3
    $region8: #{tpu_custom_call.1} parent=1 // loop_exit
      _
    %394 = vsyncpa [#allocation3], 1
    %s395 = scalar_lea.sflag [#allocation3], 1
    %396 = vsyncpa %s395, 1
    %397 = vsyncpa [#allocation6], 1
    %398 = vsyncpa [#allocation4], 1
    %s399 = scalar_lea.sflag [#allocation4], 1
    %400 = vsyncpa %s399, 1
    %401 = vsyncpa [#allocation9], 1
    %s402 = scalar_lea.sflag [#allocation9], 1
    %403 = vsyncpa %s402, 1

// kernel: tpu_custom_call.1
$region0: #{tpu_custom_call.1}
  #allocation0 [shape = 'u32[]', space=smem, size = 0x4, offset = 0x4, fixed_abs, tag = 'smem constant byte address 0x4 - core index']
  #allocation1 [shape = 'u32[144,128]{1,0:T(1,128)}', space=vmem, size = 0x12000, scoped, tag = 'internal scratch']
  %s0 = inlined_call_operand.hbm [shape: f32[2,16,32], index: 0, kind: input, shape index: {}]
  %s1 = inlined_call_operand.hbm [shape: f32[16,16], index: 1, kind: input, shape index: {}]
  %s2 = inlined_call_operand.hbm [shape: f32[2,16,32], index: 2, kind: output, shape index: {0}]
  %s3 = inlined_call_operand.hbm [shape: f32[2,16,32], index: 3, kind: output, shape index: {1}]
  %4 = xla_tuple %s2, %s3
  %s5 = sld [smem:[#allocation0]]
  $region57: #{tpu_custom_call.1} parent=0
    _
  %s7 = ssub.s32 1, %s5
  %s8 = scalar_select 0, %s7, %s5
  $region1: #{tpu_custom_call.1} parent=0
    #allocation2 [shape = 'u8[16384]{0}', space=vmem, size = 0x4000, scoped, tag = 'input window, operand 0']
    #allocation3 [shape = 's32[2]{0}', space=sflag, size = 0x8, scoped, tag = 'scoped memory for tpu_custom_call.1']
    #allocation4 [shape = 's32[2]{0}', space=sflag, size = 0x8, scoped, tag = 'scoped memory for tpu_custom_call.1']
    #allocation5 [shape = 'u8[8192]{0}', space=vmem, size = 0x2000, scoped, tag = 'input window, operand 1, single buffered']
    #allocation6 [shape = 's32[1]{0}', space=sflag, size = 0x4, scoped, tag = 'scoped memory for tpu_custom_call.1']
    #allocation7 [shape = 'u8[16384]{0}', space=vmem, size = 0x4000, scoped, tag = 'output window, operand 0']
    #allocation8 [shape = 'u8[16384]{0}', space=vmem, size = 0x4000, scoped, tag = 'output window, operand 1']
    #allocation9 [shape = 's32[2]{0}', space=sflag, size = 0x8, scoped, tag = 'scoped memory for tpu_custom_call.1']
    %9 = vsyncpa [#allocation3], 0
    %s10 = scalar_lea.sflag [#allocation3], 1
    %11 = vsyncpa %s10, 0
    %12 = vsyncpa [#allocation6], 0
    %13 = vsyncpa [#allocation4], 0
    %s14 = scalar_lea.sflag [#allocation4], 1
    %15 = vsyncpa %s14, 0
    %16 = vsyncpa [#allocation9], 0
    %s17 = scalar_lea.sflag [#allocation9], 1
    %18 = vsyncpa %s17, 0
    loop: start=0, step=1, limit=4
    $region2: #{tpu_custom_call.1} parent=1 // loop_pre_header
      _
    $region3: #{tpu_custom_call.1} parent=1 // loop_header
      %s20 = sphi 0, %s24
      %p21 = scmp.ge.s32.totalorder %s20, 4
      %s27 = sphi 0, %s39
      %s28 = sphi 0, %s35
      %s29 = sphi 0, %s27
      %s30 = sphi 0, %s28
      %s31 = sphi 0, %s29
      %s32 = sphi 0, %s30
      %s44 = sphi 0, %s46
      %s47 = sphi 0, %s44
      %s48 = sphi 0, %s47
      %s64 = sphi 0, %s48
      %s68 = sphi 0, %s68
      %s70 = sphi 0, %s68
      %s71 = sphi 0, %s70
      %s85 = sphi 0, %s71
      %s93 = sphi 0, %s95
      %s96 = sphi 0, %s93
      %s97 = sphi 0, %s96
      %s113 = sphi 0, %s97
      %s121 = sphi 0, %s123
      %s124 = sphi 0, %s121
      %s125 = sphi 0, %s124
      %s141 = sphi 0, %s125
    $region4: #{tpu_custom_call.1} parent=1 // loop_header_branch
      %23 = sbr.rel (%p21) target = $region8
    $region5: #{tpu_custom_call.1} parent=1 // loop_body
      %s25 = ssub.s32 %s20, 1
      %s26 = ssub.s32 %s20, 2
      %s33 = sadd.s32 1, %s28
      %p34 = scmp.ge.s32.totalorder %s33, 1
      %s35 = scalar_select %p34, 0, %s33
      %s36 = sadd.s32 1, %s27
      %s37 = scalar_select %p34, %s36, %s27
      %p38 = scmp.ge.s32.totalorder %s37, 2
      %s39 = scalar_select %p38, 0, %s37
      %s40 = ssub.s32 %s27, %s39
      %s41 = ssub.s32 %s28, %s35
      %s42 = sor.u32 %s40, %s41
      %p43 = scmp.eq.s32.totalorder %s42, 0
      %s45 = sadd.s32 %s44, 1
      %s46 = scalar_select %p43, %s44, %s45
      %p49 = pneg %p43
      %p50 = scmp.eq.s32.totalorder %s20, 1
      %p51 = por %p49, %p50
      %p52 = scmp.ne.s32.totalorder %s44, %s47
      %p53 = scmp.eq.s32.totalorder %s20, 0
      %p54 = por %p52, %p53
      %p55 = scmp.ne.s32.totalorder %s44, %s47
      %p56 = scmp.eq.s32.totalorder %s25, 1
      %p57 = por %p55, %p56
      %p58 = scmp.ne.s32.totalorder %s47, %s48
      %p59 = scmp.eq.s32.totalorder %s25, 0
      %p60 = por %p58, %p59
      %p61 = scmp.ne.s32.totalorder %s47, %s48
      %p62 = scmp.eq.s32.totalorder %s26, 1
      %p63 = por %p61, %p62
      %p65 = scmp.ne.s32.totalorder %s48, %s64
      %p66 = scmp.eq.s32.totalorder %s26, 0
      %p67 = por %p65, %p66
      %s69 = sadd.s32 %s68, 1
      %p72 = scmp.eq.s32.totalorder %s20, 1
      %p73 = scmp.ne.s32.totalorder %s68, %s70
      %p74 = scmp.eq.s32.totalorder %s20, 0
      %p75 = por %p73, %p74
      %p76 = scmp.ne.s32.totalorder %s68, %s70
      %p77 = scmp.eq.s32.totalorder %s25, 1
      %p78 = por %p76, %p77
      %p79 = scmp.ne.s32.totalorder %s70, %s71
      %p80 = scmp.eq.s32.totalorder %s25, 0
      %p81 = por %p79, %p80
      %p82 = scmp.ne.s32.totalorder %s70, %s71
      %p83 = scmp.eq.s32.totalorder %s26, 1
      %p84 = por %p82, %p83
      %p86 = scmp.ne.s32.totalorder %s71, %s85
      %p87 = scmp.eq.s32.totalorder %s26, 0
      %p88 = por %p86, %p87
      %s89 = ssub.s32 %s27, %s39
      %s90 = ssub.s32 %s28, %s35
      %s91 = sor.u32 %s89, %s90
      %p92 = scmp.eq.s32.totalorder %s91, 0
      %s94 = sadd.s32 %s93, 1
      %s95 = scalar_select %p92, %s93, %s94
      %p98 = pneg %p92
      %p99 = scmp.eq.s32.totalorder %s20, 1
      %p100 = por %p98, %p99
      %p101 = scmp.ne.s32.totalorder %s93, %s96
      %p102 = scmp.eq.s32.totalorder %s20, 0
      %p103 = por %p101, %p102
      %p104 = scmp.ne.s32.totalorder %s93, %s96
      %p105 = scmp.eq.s32.totalorder %s25, 1
      %p106 = por %p104, %p105
      %p107 = scmp.ne.s32.totalorder %s96, %s97
      %p108 = scmp.eq.s32.totalorder %s25, 0
      %p109 = por %p107, %p108
      %p110 = scmp.ne.s32.totalorder %s96, %s97
      %p111 = scmp.eq.s32.totalorder %s26, 1
      %p112 = por %p110, %p111
      %p114 = scmp.ne.s32.totalorder %s97, %s113
      %p115 = scmp.eq.s32.totalorder %s26, 0
      %p116 = por %p114, %p115
      %s117 = ssub.s32 %s27, %s39
      %s118 = ssub.s32 %s28, %s35
      %s119 = sor.u32 %s117, %s118
      %p120 = scmp.eq.s32.totalorder %s119, 0
      %s122 = sadd.s32 %s121, 1
      %s123 = scalar_select %p120, %s121, %s122
      %p126 = pneg %p120
      %p127 = scmp.eq.s32.totalorder %s20, 1
      %p128 = por %p126, %p127
      %p129 = scmp.ne.s32.totalorder %s121, %s124
      %p130 = scmp.eq.s32.totalorder %s20, 0
      %p131 = por %p129, %p130
      %p132 = scmp.ne.s32.totalorder %s121, %s124
      %p133 = scmp.eq.s32.totalorder %s25, 1
      %p134 = por %p132, %p133
      %p135 = scmp.ne.s32.totalorder %s124, %s125
      %p136 = scmp.eq.s32.totalorder %s25, 0
      %p137 = por %p135, %p136
      %p138 = scmp.ne.s32.totalorder %s124, %s125
      %p139 = scmp.eq.s32.totalorder %s26, 1
      %p140 = por %p138, %p139
      %p142 = scmp.ne.s32.totalorder %s125, %s141
      %p143 = scmp.eq.s32.totalorder %s26, 0
      %p144 = por %p142, %p143
      %p145 = scmp.le.s32.totalorder 1, %s20
      %p146 = scmp.lt.s32.totalorder %s20, 3
      %p147 = pnand %p145, %p146
      %p148 = pneg %p147
      // Predicated region
      $region9: #{tpu_custom_call.1} parent=5 // pred_check
        _
      $region10: #{tpu_custom_call.1} parent=5 // pred_check_branch
        %150 = sbr.rel (%p147) target = $region12
      $region11: #{tpu_custom_call.1} parent=5 // pred_region
        %s151 = ssub.s32 %s20, 1
        // Predicated region
        $region13: #{tpu_custom_call.1} parent=11 // pred_check
          %p152 = pneg %p81
        $region14: #{tpu_custom_call.1} parent=11 // pred_check_branch
          %154 = sbr.rel (%p152) target = $region16
        $region15: #{tpu_custom_call.1} parent=11 // pred_region
          %s156 = ssub.s32 256, 256
          %157 = vsyncadd [#allocation6], %s156
          %s158 = sshll.u32 [#allocation5], 4
          %s159 = int_to_ptr.vmem [resolvable:$true] %s158
          %164 = dma.hbm_to_vmem [thread:$0]  %s1, 256, %s159, [#allocation6], 128, 128, 8
        $region16: #{tpu_custom_call.1} parent=11 // pred_fallthru
          _
      $region12: #{tpu_custom_call.1} parent=5 // pred_fallthru
        _
      %p165 = scmp.lt.s32.totalorder %s20, 2
      // Predicated region
      $region17: #{tpu_custom_call.1} parent=5 // pred_check
        %p166 = pneg %p165
      $region18: #{tpu_custom_call.1} parent=5 // pred_check_branch
        %168 = sbr.rel (%p166) target = $region20
      $region19: #{tpu_custom_call.1} parent=5 // pred_region
        // Predicated region
        $region21: #{tpu_custom_call.1} parent=19 // pred_check
          %p169 = pneg %p54
        $region22: #{tpu_custom_call.1} parent=19 // pred_check_branch
          %171 = sbr.rel (%p169) target = $region24
        $region23: #{tpu_custom_call.1} parent=19 // pred_region
          %s172 = sand.u32 %s44, 1
          %s173 = scalar_lea.sflag [#allocation3], %s172
          %s174 = sand.u32 %s44, 1
          %s175 = smul.addr %s174, 16
          %s176 = scalar_lea.vmem [#allocation2], %s175
          %s178 = ssub.s32 256, 256
          %179 = vsyncadd %s173, %s178
          %s180 = smul.addr %s27, 2
          %s181 = sadd.s32 %s28, %s180
          %s182 = smul.addr %s181, 128
          %s183 = scalar_lea.hbm %s0, %s182
          %s184 = sshll.u32 %s176, 4
          %s185 = int_to_ptr.vmem [resolvable:$true] %s184
          %190 = dma.hbm_to_vmem [thread:$0]  %s183, 256, %s185, %s173, 128, 128, 8
        $region24: #{tpu_custom_call.1} parent=19 // pred_fallthru
          _
      $region20: #{tpu_custom_call.1} parent=5 // pred_fallthru
        _
      %p191 = scmp.le.s32.totalorder 1, %s20
      %p192 = scmp.lt.s32.totalorder %s20, 3
      %p193 = pnand %p191, %p192
      %p194 = pneg %p193
      // Predicated region
      $region25: #{tpu_custom_call.1} parent=5 // pred_check
        _
      $region26: #{tpu_custom_call.1} parent=5 // pred_check_branch
        %196 = sbr.rel (%p193) target = $region28
      $region27: #{tpu_custom_call.1} parent=5 // pred_region
        %s197 = ssub.s32 %s20, 1
        %s198 = sand.u32 %s47, 1
        %s199 = scalar_lea.sflag [#allocation3], %s198
        %s200 = sand.u32 %s47, 1
        %s201 = smul.addr %s200, 16
        %s202 = scalar_lea.vmem [#allocation2], %s201
        // Predicated region
        $region29: #{tpu_custom_call.1} parent=27 // pred_check
          %p203 = pneg %p60
        $region30: #{tpu_custom_call.1} parent=27 // pred_check_branch
          %205 = sbr.rel (%p203) target = $region32
        $region31: #{tpu_custom_call.1} parent=27 // pred_region
          %206 = dma.done %s199, 256
        $region32: #{tpu_custom_call.1} parent=27 // pred_fallthru
          _
        // Predicated region
        $region33: #{tpu_custom_call.1} parent=27 // pred_check
          %p207 = pneg %p81
        $region34: #{tpu_custom_call.1} parent=27 // pred_check_branch
          %209 = sbr.rel (%p207) target = $region36
        $region35: #{tpu_custom_call.1} parent=27 // pred_region
          %210 = dma.done [#allocation6], 256
        $region36: #{tpu_custom_call.1} parent=27 // pred_fallthru
          _
        %s211 = sand.u32 %s47, 1
        %s212 = scalar_lea.sflag [#allocation3], %s211
        %s213 = sand.u32 %s47, 1
        %s214 = smul.addr %s213, 16
        %s215 = scalar_lea.vmem [#allocation2], %s214
        %p216 = pneg %p60
        %p217 = pneg %p57
        %p218 = pneg %p81
        %p219 = pneg %p78
        %p220 = pneg %p109
        %p221 = pneg %p106
        %s222 = sand.u32 %s96, 1
        %s223 = scalar_lea.sflag [#allocation4], %s222
        %s224 = sand.u32 %s96, 1
        %s225 = smul.addr %s224, 16
        %s226 = scalar_lea.vmem [#allocation7], %s225
        %p227 = pneg %p137
        %p228 = pneg %p134
        %s229 = sand.u32 %s124, 1
        %s230 = scalar_lea.sflag [#allocation9], %s229
        %s231 = sand.u32 %s124, 1
        %s232 = smul.addr %s231, 16
        %s233 = scalar_lea.vmem [#allocation8], %s232
        %v234 = vld [vmem:[%s202] sm:$0xff]
        %v235 = vld [vmem:[%s202 + $0x8] sm:$0xff]
        %v236 = vld [vmem:[#allocation5] sm:$0xff]
        %v237 = vld [vmem:[#allocation5 + $0x8] sm:$0xff]
        %vm238 = vcmask 130048
        %v240 = vsel %vm238, %v236, 0
        %v243 = vsel %vm238, %v237, 0
        %245 = vmatprep.subr.mxu0 0.0
        %246 = vmatpush1.msra.mxu0 %v234
        %247 = vmatprep.subr.mxu0 0.0
        %248 = vmatpush1.msra.mxu0 %v235
        %249 = vmatprep.subr.mxu0 0.0
        %250 = vmatpush1.msra.mxu0 0.0
        %251 = vmatprep.subr.mxu0 0.0
        %252 = vmatpush1.msra.mxu0 0.0
        %253 = vmatprep.subr.mxu0 0.0
        %254 = vmatpush1.msra.mxu0 0.0
        %255 = vmatprep.subr.mxu0 0.0
        %256 = vmatpush1.msra.mxu0 0.0
        %257 = vmatprep.subr.mxu0 0.0
        %258 = vmatpush1.msra.mxu0 0.0
        %259 = vmatprep.subr.mxu0 0.0
        %260 = vmatpush1.msra.mxu0 0.0
        %261 = vmatprep.subr.mxu0 0.0
        %262 = vmatpush1.msra.mxu0 0.0
        %263 = vmatprep.subr.mxu0 0.0
        %264 = vmatpush1.msra.mxu0 0.0
        %265 = vmatprep.subr.mxu0 0.0
        %266 = vmatpush1.msra.mxu0 0.0
        %267 = vmatprep.subr.mxu0 0.0
        %268 = vmatpush1.msra.mxu0 0.0
        %269 = vmatprep.subr.mxu0 0.0
        %270 = vmatpush1.msra.mxu0 0.0
        %271 = vmatprep.subr.mxu0 0.0
        %272 = vmatpush1.msra.mxu0 0.0
        %273 = vmatprep.subr.mxu0 0.0
        %274 = vmatpush1.msra.mxu0 0.0
        %275 = vmatprep.subr.mxu0 0.0
        %276 = vmatpush1.msra.mxu0 0.0
        %277 = vmatprep.subr.mxu0 0.0
        %278 = vmatpush1.msra.mxu0 0.0
        %279 = vmatprep.subr.mxu0 0.0
        %280 = vmatpush1.msra.mxu0 0.0
        %281 = vmatprep.subr.mxu0 0.0
        %282 = vmatpush1.msra.mxu0 0.0
        %283 = vmatprep.subr.mxu0 0.0
        %284 = vmatpush1.msra.mxu0 0.0
        %285 = vmatprep.subr.mxu0 0.0
        %286 = vmatpush1.msra.mxu0 0.0
        %287 = vmatprep.subr.mxu0 0.0
        %288 = vmatpush1.msra.mxu0 0.0
        %289 = vmatprep.subr.mxu0 0.0
        %290 = vmatpush1.msra.mxu0 0.0
        %291 = vmatprep.subr.mxu0 0.0
        %292 = vmatpush1.msra.mxu0 0.0
        %293 = vmatprep.subr.mxu0 0.0
        %294 = vmatpush1.msra.mxu0 0.0
        %295 = vmatprep.subr.mxu0 0.0
        %296 = vmatpush1.msra.mxu0 0.0
        %297 = vmatprep.subr.mxu0 0.0
        %298 = vmatpush1.msra.mxu0 0.0
        %299 = vmatprep.subr.mxu0 0.0
        %300 = vmatpush1.msra.mxu0 0.0
        %301 = vmatprep.subr.mxu0 0.0
        %302 = vmatpush1.msra.mxu0 0.0
        %303 = vmatprep.subr.mxu0 0.0
        %304 = vmatpush1.msra.mxu0 0.0
        %305 = vmatprep.subr.mxu0 0.0
        %306 = vmatpush1.msra.mxu0 0.0
        %307 = vmatprep.subr.mxu0 0.0
        %308 = vmatpush1.msra.mxu0 0.0
        %309 = vmatprep.mubr.f32.mxu0 0.0
        %310 = vmatmul.mubr.f32.gmra.mrb[0].mxu0 %v240
        %v311 = vpop.f32.mrb[0].mxu0
        %v312 = vadd.f32 0.0, %v311
        %v313 = vpop.f32.mrb[0].mxu0
        %314 = vmatprep.mubr.f32.mxu0 0.0
        %315 = vmatmul.mubr.f32.gmra.mrb[0].mxu0 %v243
        %v316 = vpop.f32.mrb[0].mxu0
        %v317 = vadd.f32 0.0, %v316
        %v318 = vpop.f32.mrb[0].mxu0
        %319 = vdwg.mxu0
        %vm320 = vcmask 261120
        %321 = vst.msk [vmem:[%s226] sm:$0xff] %vm320, %v312
        %322 = vst.msk [vmem:[%s226 + $0x8] sm:$0xff] %vm320, %v317
        %v323 = vsub.f32 %v234, %v312
        %v324 = vsub.f32 %v235, %v317
        %325 = vst.msk [vmem:[%s233] sm:$0xff] %vm320, %v323
        %326 = vst.msk [vmem:[%s233 + $0x8] sm:$0xff] %vm320, %v324
        %s327 = sand.u32 %s96, 1
        %s328 = scalar_lea.sflag [#allocation4], %s327
        %s329 = sand.u32 %s96, 1
        %s330 = smul.addr %s329, 16
        %s331 = scalar_lea.vmem [#allocation7], %s330
        %s332 = sand.u32 %s124, 1
        %s333 = scalar_lea.sflag [#allocation9], %s332
        %s334 = sand.u32 %s124, 1
        %s335 = smul.addr %s334, 16
        %s336 = scalar_lea.vmem [#allocation8], %s335
        // Predicated region
        $region37: #{tpu_custom_call.1} parent=27 // pred_check
          %p337 = pneg %p106
        $region38: #{tpu_custom_call.1} parent=27 // pred_check_branch
          %339 = sbr.rel (%p337) target = $region40
        $region39: #{tpu_custom_call.1} parent=27 // pred_region
          %s341 = ssub.s32 256, 256
          %342 = vsyncadd %s328, %s341
          %s343 = smul.addr %s29, 2
          %s344 = sadd.s32 %s30, %s343
          %s345 = smul.addr %s344, 128
          %s346 = scalar_lea.hbm %s2, %s345
          %s347 = sshll.u32 %s331, 4
          %s348 = int_to_ptr.vmem [resolvable:$true] %s347
          %353 = dma.vmem_to_hbm [thread:$0]  %s348, 256, %s346, %s328, 128, 128, 8
        $region40: #{tpu_custom_call.1} parent=27 // pred_fallthru
          _
        // Predicated region
        $region41: #{tpu_custom_call.1} parent=27 // pred_check
          %p354 = pneg %p134
        $region42: #{tpu_custom_call.1} parent=27 // pred_check_branch
          %356 = sbr.rel (%p354) target = $region44
        $region43: #{tpu_custom_call.1} parent=27 // pred_region
          %s358 = ssub.s32 256, 256
          %359 = vsyncadd %s333, %s358
          %s360 = smul.addr %s29, 2
          %s361 = sadd.s32 %s30, %s360
          %s362 = smul.addr %s361, 128
          %s363 = scalar_lea.hbm %s3, %s362
          %s364 = sshll.u32 %s336, 4
          %s365 = int_to_ptr.vmem [resolvable:$true] %s364
          %370 = dma.vmem_to_hbm [thread:$0]  %s365, 256, %s363, %s333, 128, 128, 8
        $region44: #{tpu_custom_call.1} parent=27 // pred_fallthru
          _
      $region28: #{tpu_custom_call.1} parent=5 // pred_fallthru
        _
      %p371 = scmp.le.s32.totalorder 2, %s20
      // Predicated region
      $region45: #{tpu_custom_call.1} parent=5 // pred_check
        %p372 = pneg %p371
      $region46: #{tpu_custom_call.1} parent=5 // pred_check_branch
        %374 = sbr.rel (%p372) target = $region48
      $region47: #{tpu_custom_call.1} parent=5 // pred_region
        %s375 = ssub.s32 %s20, 2
        // Predicated region
        $region49: #{tpu_custom_call.1} parent=47 // pred_check
          %p376 = pneg %p112
        $region50: #{tpu_custom_call.1} parent=47 // pred_check_branch
          %378 = sbr.rel (%p376) target = $region52
        $region51: #{tpu_custom_call.1} parent=47 // pred_region
          %s379 = sand.u32 %s97, 1
          %s380 = scalar_lea.sflag [#allocation4], %s379
          %s381 = sand.u32 %s97, 1
          %s382 = smul.addr %s381, 16
          %s383 = scalar_lea.vmem [#allocation7], %s382
          %384 = dma.done %s380, 256
        $region52: #{tpu_custom_call.1} parent=47 // pred_fallthru
          _
        // Predicated region
        $region53: #{tpu_custom_call.1} parent=47 // pred_check
          %p385 = pneg %p140
        $region54: #{tpu_custom_call.1} parent=47 // pred_check_branch
          %387 = sbr.rel (%p385) target = $region56
        $region55: #{tpu_custom_call.1} parent=47 // pred_region
          %s388 = sand.u32 %s125, 1
          %s389 = scalar_lea.sflag [#allocation9], %s388
          %s390 = sand.u32 %s125, 1
          %s391 = smul.addr %s390, 16
          %s392 = scalar_lea.vmem [#allocation8], %s391
          %393 = dma.done %s389, 256
        $region56: #{tpu_custom_call.1} parent=47 // pred_fallthru
          _
      $region48: #{tpu_custom_call.1} parent=5 // pred_fallthru
        _
    $region6: #{tpu_custom_call.1} parent=1 // loop_footer
      %s24 = sadd.s32 1, %s20
    $region7: #{tpu_custom_call.1} parent=1 // loop_footer_branch
      %19 = sbr.rel target = $region3
    $region8: #{tpu_custom_call.1} parent=1 // loop_exit
      _
    %394 = vsyncpa [#allocation3], 1
    %s395 = scalar_lea.sflag [#allocation3], 1
    %396 = vsyncpa %s395, 1
    %397 = vsyncpa [#allocation6], 1
    %398 = vsyncpa [#allocation4], 1
    %s399 = scalar_lea.sflag [#allocation4], 1
    %400 = vsyncpa %s399, 1
    %401 = vsyncpa [#allocation9], 1
    %s402 = scalar_lea.sflag [#allocation9], 1
    %403 = vsyncpa %s402, 1

</llo_original>
